<compile_context>
chip_gen: v5e
topology: v5e:2x2
jax: 0.10.0
libtpu: 0.0.40
codegen_flags: <defaults>
</compile_context>

<pallas_src>
import functools

import jax
import jax.numpy as jnp
from jax.experimental import pallas as pl
from jax.experimental.pallas import tpu as pltpu


def _seq_model_kernel(
    x_ref,          # (TR, d_in)         f32 (cast to bf16 at the dot)
    w_enc_ref,      # (d_in, d_model)    bf16
    b_enc_ref,      # (1, d_model)       f32
    gamma_ref,      # (1, d_model)       f32
    beta_ref,       # (1, d_model)       f32
    w1_ref,         # (d_model, d_ff)    bf16
    b1_ref,         # (1, d_ff)          f32
    w2_ref,         # (d_ff, d_model)    bf16
    b2_ref,         # (1, d_model)       f32
    w_dec_ref,      # (d_model, d_out_p) bf16
    b_dec_ref,      # (1, d_out_p)       f32
    o_ref,          # (TR, d_out_p)      bf16
):
    bf16 = jnp.bfloat16
    f32 = jnp.float32

    # ---- encoder: Linear(d_in -> d_model), bf16 MXU, f32 accumulate ----
    h = jnp.dot(x_ref[...].astype(bf16), w_enc_ref[...],
                preferred_element_type=f32) + b_enc_ref[...]

    # ---- model: pre-norm residual MLP block (elementwise math in f32) ----
    # LayerNorm with fused statistics: one pass producing sum and sum-of-squares.
    inv_n = 1.0 / h.shape[-1]
    s1 = jnp.sum(h, axis=-1, keepdims=True)
    s2 = jnp.sum(h * h, axis=-1, keepdims=True)
    mean = s1 * inv_n
    var = s2 * inv_n - mean * mean
    hn = (h - mean) * jax.lax.rsqrt(var + 1e-5)
    hn = hn * gamma_ref[...] + beta_ref[...]

    z = jnp.dot(hn.astype(bf16), w1_ref[...],
                preferred_element_type=f32) + b1_ref[...]
    # TODO(synk): torch.nn.GELU() defaults to exact erf; use
    # jax.nn.gelu(z, approximate=False) if bit-parity with PyTorch is required
    # (tanh approximation kept here and in the reference for robust lowering).
    z = jax.nn.gelu(z)
    z = jnp.dot(z.astype(bf16), w2_ref[...],
                preferred_element_type=f32) + b2_ref[...]
    h = h + z  # residual (f32)

    # ---- decoder: Linear(d_model -> d_out) ----
    y = jnp.dot(h.astype(bf16), w_dec_ref[...],
                preferred_element_type=f32) + b_dec_ref[...]

    o_ref[...] = y.astype(o_ref.dtype)


def _round_up(n, m):
    return ((n + m - 1) // m) * m


def _pick_row_tile(rows, max_tile=256, min_steps=2):
    """Row tile: multiple of 8, <= max_tile, >= min_steps grid steps (v7x
    megacore), shrunk while that keeps reducing row padding (MXU M >= 64)."""
    tile = min(max_tile, max(8, _round_up(-(-rows // min_steps), 8)))
    best, best_pad = tile, _round_up(rows, tile) - rows
    t = tile
    while t > 64 and best_pad > 0:
        t = max(64, t // 2)
        pad = _round_up(rows, t) - rows
        if pad < best_pad:
            best, best_pad = t, pad
        if t == 64:
            break
    return best


@functools.partial(jax.jit, static_argnames=("max_row_tile",))
def sequence_model_forward(x, params, max_row_tile=256):
    """x: (batch, seq, d_input) -> (batch, seq, d_output)."""
    B, S, d_in = x.shape
    d_model = params["w_enc"].shape[1]
    d_ff = params["w1"].shape[1]
    d_out = params["w_dec"].shape[1]

    rows = B * S
    row_tile = _pick_row_tile(rows, max_tile=max_row_tile, min_steps=2)
    rows_p = _round_up(rows, row_tile)       # minimal sublane-aligned padding
    d_out_p = _round_up(d_out, 128)          # lane-dense output stores

    bf16 = jnp.bfloat16

    # ---- inputs: no cast / no lane padding for x (avoids an extra HBM pass) ----
    x_flat = x.reshape(rows, d_in)
    if rows_p != rows:
        x_flat = jnp.pad(x_flat, ((0, rows_p - rows), (0, 0)))

    # weights cast once to bf16 for the MXU; only the decoder gets lane padding
    w_enc = params["w_enc"].astype(bf16)
    w1 = params["w1"].astype(bf16)
    w2 = params["w2"].astype(bf16)
    w_dec = jnp.pad(params["w_dec"].astype(bf16), ((0, 0), (0, d_out_p - d_out)))
    b_dec = jnp.pad(params["b_dec"], ((0, 0), (0, d_out_p - d_out)))

    # ---- VMEM budget: single-buffered weights/biases + double-buffered I/O
    #      tiles + live f32 activations, with headroom; chip-aware cap ----
    weight_bytes = 2 * (d_in * d_model + 2 * d_model * d_ff + d_model * d_out_p)
    bias_bytes = 4 * (3 * d_model + d_ff + d_out_p)
    io_bytes = 2 * (row_tile * d_in * 4 + row_tile * d_out_p * 2)
    act_bytes = 4 * row_tile * (4 * d_model + 2 * d_ff)
    est = int(1.5 * (weight_bytes + bias_bytes + io_bytes + act_bytes))
    try:
        phys_vmem = int(pltpu.get_tpu_info().vmem_capacity_bytes)
    except Exception:
        phys_vmem = 64 << 20                 # conservative (v7x per-TC) fallback
    vmem_limit = min(max(est, 4 << 20), int(0.75 * phys_vmem))

    flops = 2 * rows_p * (d_in * d_model + 2 * d_model * d_ff + d_model * d_out_p)
    transcendentals = rows_p * d_ff + rows_p          # gelu tanh per elem + rsqrt per row
    bytes_accessed = (rows_p * d_in * 4 + rows_p * d_out_p * 2
                      + weight_bytes + bias_bytes)    # weights streamed once

    def rep(shape):
        # Grid-invariant operand: constant index_map => single-buffer (no DMA
        # benefit from double-buffering; halves the resident weight footprint).
        return pl.BlockSpec(shape, lambda i: (0, 0),
                            pipeline_mode=pl.Buffered(1))

    out_flat = pl.pallas_call(
        _seq_model_kernel,
        out_shape=jax.ShapeDtypeStruct((rows_p, d_out_p), jnp.bfloat16),
        grid_spec=pltpu.PrefetchScalarGridSpec(
            num_scalar_prefetch=0,
            grid=(rows_p // row_tile,),
            in_specs=[
                pl.BlockSpec((row_tile, d_in), lambda i: (i, 0)),
                rep((d_in, d_model)),
                rep((1, d_model)),
                rep((1, d_model)),
                rep((1, d_model)),
                rep((d_model, d_ff)),
                rep((1, d_ff)),
                rep((d_ff, d_model)),
                rep((1, d_model)),
                rep((d_model, d_out_p)),
                rep((1, d_out_p)),
            ],
            out_specs=pl.BlockSpec((row_tile, d_out_p), lambda i: (i, 0)),
        ),
        compiler_params=pltpu.CompilerParams(
            dimension_semantics=("parallel",),
            vmem_limit_bytes=vmem_limit,
        ),
        cost_estimate=pl.CostEstimate(
            flops=flops,
            transcendentals=transcendentals,
            bytes_accessed=bytes_accessed,
        ),
    )(
        x_flat,
        w_enc, params["b_enc"],
        params["gamma"], params["beta"],
        w1, params["b1"],
        w2, params["b2"],
        w_dec, b_dec,
    )
    return out_flat[:rows, :d_out].reshape(B, S, d_out).astype(x.dtype)


def reference_forward(x, params):
    """Pure-JAX reference with the same bf16-at-MXU / f32-elementwise numerics."""
    bf16 = jnp.bfloat16
    h = jnp.dot(x.astype(bf16), params["w_enc"].astype(bf16),
                preferred_element_type=jnp.float32) + params["b_enc"]
    mean = jnp.mean(h, axis=-1, keepdims=True)
    var = jnp.mean((h - mean) ** 2, axis=-1, keepdims=True)
    hn = (h - mean) * jax.lax.rsqrt(var + 1e-5)
    hn = hn * params["gamma"] + params["beta"]
    z = jnp.dot(hn.astype(bf16), params["w1"].astype(bf16),
                preferred_element_type=jnp.float32) + params["b1"]
    z = jax.nn.gelu(z)
    z = jnp.dot(z.astype(bf16), params["w2"].astype(bf16),
                preferred_element_type=jnp.float32) + params["b2"]
    h = h + z
    y = jnp.dot(h.astype(bf16), params["w_dec"].astype(bf16),
                preferred_element_type=jnp.float32) + params["b_dec"]
    return y.astype(x.dtype)


def init_params(key, d_in, d_model, d_ff, d_out):
    ks = jax.random.split(key, 6)
    scale = lambda fan_in: 1.0 / jnp.sqrt(fan_in)
    return {
        "w_enc": jax.random.normal(ks[0], (d_in, d_model), jnp.float32) * scale(d_in),
        "b_enc": jnp.zeros((1, d_model), jnp.float32),
        "gamma": jnp.ones((1, d_model), jnp.float32),
        "beta": jnp.zeros((1, d_model), jnp.float32),
        "w1": jax.random.normal(ks[1], (d_model, d_ff), jnp.float32) * scale(d_model),
        "b1": jnp.zeros((1, d_ff), jnp.float32),
        "w2": jax.random.normal(ks[2], (d_ff, d_model), jnp.float32) * scale(d_ff),
        "b2": jnp.zeros((1, d_model), jnp.float32),
        "w_dec": jax.random.normal(ks[3], (d_model, d_out), jnp.float32) * scale(d_model),
        "b_dec": jnp.zeros((1, d_out), jnp.float32),
    }


if __name__ == "__main__":
    key = jax.random.PRNGKey(0)
    kx, kp = jax.random.split(key)

    # small shapes: batch=2, seq=8, d_input=4, d_model=32, d_ff=64, d_output=4
    B, S, d_in, d_model, d_ff, d_out = 2, 8, 4, 32, 64, 4
    x = jax.random.normal(kx, (B, S, d_in), jnp.float32)
    params = init_params(kp, d_in, d_model, d_ff, d_out)

    y = sequence_model_forward(x, params)
    y = jax.block_until_ready(y)

    y_ref = reference_forward(x, params)
    assert y.shape == (B, S, d_out)
    assert jnp.allclose(y, y_ref, atol=2e-2, rtol=2e-2), "mismatch vs reference"

    print("KERNEL_OK")
</pallas_src>

<mosaic_0001>
module attributes {stable_mosaic.version = 11 : i64} {
  func.func @_seq_model_kernel(%arg0: i32, %arg1: memref<8x4xf32, #tpu.memory_space<vmem>>, %arg2: memref<4x32xbf16, #tpu.memory_space<vmem>>, %arg3: memref<1x32xf32, #tpu.memory_space<vmem>>, %arg4: memref<1x32xf32, #tpu.memory_space<vmem>>, %arg5: memref<1x32xf32, #tpu.memory_space<vmem>>, %arg6: memref<32x64xbf16, #tpu.memory_space<vmem>>, %arg7: memref<1x64xf32, #tpu.memory_space<vmem>>, %arg8: memref<64x32xbf16, #tpu.memory_space<vmem>>, %arg9: memref<1x32xf32, #tpu.memory_space<vmem>>, %arg10: memref<32x128xbf16, #tpu.memory_space<vmem>>, %arg11: memref<1x128xf32, #tpu.memory_space<vmem>>, %arg12: memref<8x128xbf16, #tpu.memory_space<vmem>>) attributes {dimension_semantics = [#tpu.dimension_semantics<parallel>], iteration_bounds = array<i64: 2>, scalar_prefetch = 0 : i64, scratch_operands = 0 : i64, tpu.core_type = #tpu.core_type<tc>, window_params = [{transform_indices = @transform_0, window_bounds = array<i64: 8, 4>}, {pipeline_mode = #tpu.pipeline_mode<synchronous>, transform_indices = @transform_1, window_bounds = array<i64: 4, 32>}, {pipeline_mode = #tpu.pipeline_mode<synchronous>, transform_indices = @transform_2, window_bounds = array<i64: 1, 32>}, {pipeline_mode = #tpu.pipeline_mode<synchronous>, transform_indices = @transform_3, window_bounds = array<i64: 1, 32>}, {pipeline_mode = #tpu.pipeline_mode<synchronous>, transform_indices = @transform_4, window_bounds = array<i64: 1, 32>}, {pipeline_mode = #tpu.pipeline_mode<synchronous>, transform_indices = @transform_5, window_bounds = array<i64: 32, 64>}, {pipeline_mode = #tpu.pipeline_mode<synchronous>, transform_indices = @transform_6, window_bounds = array<i64: 1, 64>}, {pipeline_mode = #tpu.pipeline_mode<synchronous>, transform_indices = @transform_7, window_bounds = array<i64: 64, 32>}, {pipeline_mode = #tpu.pipeline_mode<synchronous>, transform_indices = @transform_8, window_bounds = array<i64: 1, 32>}, {pipeline_mode = #tpu.pipeline_mode<synchronous>, transform_indices = @transform_9, window_bounds = array<i64: 32, 128>}, {pipeline_mode = #tpu.pipeline_mode<synchronous>, transform_indices = @transform_10, window_bounds = array<i64: 1, 128>}, {transform_indices = @transform_11, window_bounds = array<i64: 8, 128>}]} {
    %c0 = arith.constant 0 : index
    %c0_0 = arith.constant 0 : index
    %0 = vector.load %arg1[%c0, %c0_0] : memref<8x4xf32, #tpu.memory_space<vmem>>, vector<8x4xf32>
    %1 = arith.truncf %0 : vector<8x4xf32> to vector<8x4xbf16>
    %c0_1 = arith.constant 0 : index
    %c0_2 = arith.constant 0 : index
    %2 = vector.load %arg2[%c0_1, %c0_2] : memref<4x32xbf16, #tpu.memory_space<vmem>>, vector<4x32xbf16>
    %cst = arith.constant dense<0.000000e+00> : vector<8x32xf32>
    %3 = tpu.matmul %1, %2, %cst {dimension_numbers = #tpu.dot_dimension_numbers<[1], [0], [0], [1], [0, 0, 1, 1], [], []>} : vector<8x4xbf16>, vector<4x32xbf16>, vector<8x32xf32> -> vector<8x32xf32>
    %c0_3 = arith.constant 0 : index
    %c0_4 = arith.constant 0 : index
    %4 = vector.load %arg3[%c0_3, %c0_4] : memref<1x32xf32, #tpu.memory_space<vmem>>, vector<1x32xf32>
    %5 = vector.broadcast %4 : vector<1x32xf32> to vector<8x32xf32>
    %6 = arith.addf %3, %5 : vector<8x32xf32>
    %cst_5 = arith.constant dense<0.000000e+00> : vector<8xf32>
    %7 = vector.multi_reduction <add>, %6, %cst_5 [1] : vector<8x32xf32> to vector<8xf32>
    %8 = vector.shape_cast %7 : vector<8xf32> to vector<8x1xf32>
    %9 = arith.mulf %6, %6 : vector<8x32xf32>
    %cst_6 = arith.constant dense<0.000000e+00> : vector<8xf32>
    %10 = vector.multi_reduction <add>, %9, %cst_6 [1] : vector<8x32xf32> to vector<8xf32>
    %11 = vector.shape_cast %10 : vector<8xf32> to vector<8x1xf32>
    %cst_7 = arith.constant 3.125000e-02 : f32
    %12 = vector.broadcast %cst_7 : f32 to vector<8x1xf32>
    %13 = arith.mulf %8, %12 : vector<8x1xf32>
    %cst_8 = arith.constant 3.125000e-02 : f32
    %14 = vector.broadcast %cst_8 : f32 to vector<8x1xf32>
    %15 = arith.mulf %11, %14 : vector<8x1xf32>
    %16 = arith.mulf %13, %13 : vector<8x1xf32>
    %17 = arith.subf %15, %16 : vector<8x1xf32>
    %18 = vector.broadcast %13 : vector<8x1xf32> to vector<8x32xf32>
    %19 = arith.subf %6, %18 : vector<8x32xf32>
    %cst_9 = arith.constant 9.99999974E-6 : f32
    %20 = vector.broadcast %cst_9 : f32 to vector<8x1xf32>
    %21 = arith.addf %17, %20 : vector<8x1xf32>
    %22 = math.rsqrt %21 : vector<8x1xf32>
    %23 = vector.broadcast %22 : vector<8x1xf32> to vector<8x32xf32>
    %24 = arith.mulf %19, %23 : vector<8x32xf32>
    %c0_10 = arith.constant 0 : index
    %c0_11 = arith.constant 0 : index
    %25 = vector.load %arg4[%c0_10, %c0_11] : memref<1x32xf32, #tpu.memory_space<vmem>>, vector<1x32xf32>
    %26 = vector.broadcast %25 : vector<1x32xf32> to vector<8x32xf32>
    %27 = arith.mulf %24, %26 : vector<8x32xf32>
    %c0_12 = arith.constant 0 : index
    %c0_13 = arith.constant 0 : index
    %28 = vector.load %arg5[%c0_12, %c0_13] : memref<1x32xf32, #tpu.memory_space<vmem>>, vector<1x32xf32>
    %29 = vector.broadcast %28 : vector<1x32xf32> to vector<8x32xf32>
    %30 = arith.addf %27, %29 : vector<8x32xf32>
    %31 = arith.truncf %30 : vector<8x32xf32> to vector<8x32xbf16>
    %c0_14 = arith.constant 0 : index
    %c0_15 = arith.constant 0 : index
    %32 = vector.load %arg6[%c0_14, %c0_15] : memref<32x64xbf16, #tpu.memory_space<vmem>>, vector<32x64xbf16>
    %cst_16 = arith.constant dense<0.000000e+00> : vector<8x64xf32>
    %33 = tpu.matmul %31, %32, %cst_16 {dimension_numbers = #tpu.dot_dimension_numbers<[1], [0], [0], [1], [0, 0, 1, 1], [], []>} : vector<8x32xbf16>, vector<32x64xbf16>, vector<8x64xf32> -> vector<8x64xf32>
    %c0_17 = arith.constant 0 : index
    %c0_18 = arith.constant 0 : index
    %34 = vector.load %arg7[%c0_17, %c0_18] : memref<1x64xf32, #tpu.memory_space<vmem>>, vector<1x64xf32>
    %35 = vector.broadcast %34 : vector<1x64xf32> to vector<8x64xf32>
    %36 = arith.addf %33, %35 : vector<8x64xf32>
    %37 = arith.mulf %36, %36 : vector<8x64xf32>
    %38 = arith.mulf %36, %37 : vector<8x64xf32>
    %cst_19 = arith.constant 4.471500e-02 : f32
    %39 = vector.broadcast %cst_19 : f32 to vector<8x64xf32>
    %40 = arith.mulf %39, %38 : vector<8x64xf32>
    %41 = arith.addf %36, %40 : vector<8x64xf32>
    %cst_20 = arith.constant 0.797884583 : f32
    %42 = vector.broadcast %cst_20 : f32 to vector<8x64xf32>
    %43 = arith.mulf %42, %41 : vector<8x64xf32>
    %44 = math.tanh %43 : vector<8x64xf32>
    %cst_21 = arith.constant 1.000000e+00 : f32
    %45 = vector.broadcast %cst_21 : f32 to vector<8x64xf32>
    %46 = arith.addf %45, %44 : vector<8x64xf32>
    %cst_22 = arith.constant 5.000000e-01 : f32
    %47 = vector.broadcast %cst_22 : f32 to vector<8x64xf32>
    %48 = arith.mulf %47, %46 : vector<8x64xf32>
    %49 = arith.mulf %36, %48 : vector<8x64xf32>
    %50 = arith.truncf %49 : vector<8x64xf32> to vector<8x64xbf16>
    %c0_23 = arith.constant 0 : index
    %c0_24 = arith.constant 0 : index
    %51 = vector.load %arg8[%c0_23, %c0_24] : memref<64x32xbf16, #tpu.memory_space<vmem>>, vector<64x32xbf16>
    %cst_25 = arith.constant dense<0.000000e+00> : vector<8x32xf32>
    %52 = tpu.matmul %50, %51, %cst_25 {dimension_numbers = #tpu.dot_dimension_numbers<[1], [0], [0], [1], [0, 0, 1, 1], [], []>} : vector<8x64xbf16>, vector<64x32xbf16>, vector<8x32xf32> -> vector<8x32xf32>
    %c0_26 = arith.constant 0 : index
    %c0_27 = arith.constant 0 : index
    %53 = vector.load %arg9[%c0_26, %c0_27] : memref<1x32xf32, #tpu.memory_space<vmem>>, vector<1x32xf32>
    %54 = vector.broadcast %53 : vector<1x32xf32> to vector<8x32xf32>
    %55 = arith.addf %52, %54 : vector<8x32xf32>
    %56 = arith.addf %6, %55 : vector<8x32xf32>
    %57 = arith.truncf %56 : vector<8x32xf32> to vector<8x32xbf16>
    %c0_28 = arith.constant 0 : index
    %c0_29 = arith.constant 0 : index
    %58 = vector.load %arg10[%c0_28, %c0_29] : memref<32x128xbf16, #tpu.memory_space<vmem>>, vector<32x128xbf16>
    %cst_30 = arith.constant dense<0.000000e+00> : vector<8x128xf32>
    %59 = tpu.matmul %57, %58, %cst_30 {dimension_numbers = #tpu.dot_dimension_numbers<[1], [0], [0], [1], [0, 0, 1, 1], [], []>} : vector<8x32xbf16>, vector<32x128xbf16>, vector<8x128xf32> -> vector<8x128xf32>
    %c0_31 = arith.constant 0 : index
    %c0_32 = arith.constant 0 : index
    %60 = vector.load %arg11[%c0_31, %c0_32] : memref<1x128xf32, #tpu.memory_space<vmem>>, vector<1x128xf32>
    %61 = vector.broadcast %60 : vector<1x128xf32> to vector<8x128xf32>
    %62 = arith.addf %59, %61 : vector<8x128xf32>
    %63 = arith.truncf %62 : vector<8x128xf32> to vector<8x128xbf16>
    %c0_33 = arith.constant 0 : index
    %c0_34 = arith.constant 0 : index
    %64 = vector.load %arg12[%c0_33, %c0_34] : memref<8x128xbf16, #tpu.memory_space<vmem>>, vector<8x128xbf16>
    tpu.vector_store %arg12[%c0_33, %c0_34], %63 {strides = array<i32>} : memref<8x128xbf16, #tpu.memory_space<vmem>>, vector<8x128xbf16>,
    return
  }
  func.func @transform_0(%arg0: i32) -> (i32, i32) {
    %c0_i32 = arith.constant 0 : i32
    %c0_i32_0 = arith.constant 0 : i32
    return %arg0, %c0_i32 : i32, i32
  }
  func.func @transform_1(%arg0: i32) -> (i32, i32) {
    %c0_i32 = arith.constant 0 : i32
    %c0_i32_0 = arith.constant 0 : i32
    %c0_i32_1 = arith.constant 0 : i32
    return %c0_i32, %c0_i32_0 : i32, i32
  }
  func.func @transform_2(%arg0: i32) -> (i32, i32) {
    %c0_i32 = arith.constant 0 : i32
    %c0_i32_0 = arith.constant 0 : i32
    %c0_i32_1 = arith.constant 0 : i32
    return %c0_i32, %c0_i32_0 : i32, i32
  }
  func.func @transform_3(%arg0: i32) -> (i32, i32) {
    %c0_i32 = arith.constant 0 : i32
    %c0_i32_0 = arith.constant 0 : i32
    %c0_i32_1 = arith.constant 0 : i32
    return %c0_i32, %c0_i32_0 : i32, i32
  }
  func.func @transform_4(%arg0: i32) -> (i32, i32) {
    %c0_i32 = arith.constant 0 : i32
    %c0_i32_0 = arith.constant 0 : i32
    %c0_i32_1 = arith.constant 0 : i32
    return %c0_i32, %c0_i32_0 : i32, i32
  }
  func.func @transform_5(%arg0: i32) -> (i32, i32) {
    %c0_i32 = arith.constant 0 : i32
    %c0_i32_0 = arith.constant 0 : i32
    %c0_i32_1 = arith.constant 0 : i32
    return %c0_i32, %c0_i32_0 : i32, i32
  }
  func.func @transform_6(%arg0: i32) -> (i32, i32) {
    %c0_i32 = arith.constant 0 : i32
    %c0_i32_0 = arith.constant 0 : i32
    %c0_i32_1 = arith.constant 0 : i32
    return %c0_i32, %c0_i32_0 : i32, i32
  }
  func.func @transform_7(%arg0: i32) -> (i32, i32) {
    %c0_i32 = arith.constant 0 : i32
    %c0_i32_0 = arith.constant 0 : i32
    %c0_i32_1 = arith.constant 0 : i32
    return %c0_i32, %c0_i32_0 : i32, i32
  }
  func.func @transform_8(%arg0: i32) -> (i32, i32) {
    %c0_i32 = arith.constant 0 : i32
    %c0_i32_0 = arith.constant 0 : i32
    %c0_i32_1 = arith.constant 0 : i32
    return %c0_i32, %c0_i32_0 : i32, i32
  }
  func.func @transform_9(%arg0: i32) -> (i32, i32) {
    %c0_i32 = arith.constant 0 : i32
    %c0_i32_0 = arith.constant 0 : i32
    %c0_i32_1 = arith.constant 0 : i32
    return %c0_i32, %c0_i32_0 : i32, i32
  }
  func.func @transform_10(%arg0: i32) -> (i32, i32) {
    %c0_i32 = arith.constant 0 : i32
    %c0_i32_0 = arith.constant 0 : i32
    %c0_i32_1 = arith.constant 0 : i32
    return %c0_i32, %c0_i32_0 : i32, i32
  }
  func.func @transform_11(%arg0: i32) -> (i32, i32) {
    %c0_i32 = arith.constant 0 : i32
    %c0_i32_0 = arith.constant 0 : i32
    return %arg0, %c0_i32 : i32, i32
  }
}

</mosaic_0001>

<llo_original>
// kernel: sequence_model_forward.1
$region0: #{sequence_model_forward.1}
  #allocation0 [shape = 'u32[]', space=smem, size = 0x4, offset = 0x4, fixed_abs, tag = 'smem constant byte address 0x4 - core index']
  #allocation1 [shape = 'u32[72,128]{1,0:T(1,128)}', space=vmem, size = 0x9000, scoped, tag = 'internal scratch']
  %s0 = inlined_call_operand.vmem [shape: f32[16,4], index: 0, kind: input, shape index: {}]
  %s1 = inlined_call_operand.vmem [shape: bf16[4,32], index: 1, kind: input, shape index: {}]
  %s2 = inlined_call_operand.vmem [shape: f32[1,32], index: 2, kind: input, shape index: {}]
  %s3 = inlined_call_operand.vmem [shape: f32[1,32], index: 3, kind: input, shape index: {}]
  %s4 = inlined_call_operand.vmem [shape: f32[1,32], index: 4, kind: input, shape index: {}]
  %s5 = inlined_call_operand.vmem [shape: bf16[32,64], index: 5, kind: input, shape index: {}]
  %s6 = inlined_call_operand.vmem [shape: f32[1,64], index: 6, kind: input, shape index: {}]
  %s7 = inlined_call_operand.vmem [shape: bf16[64,32], index: 7, kind: input, shape index: {}]
  %s8 = inlined_call_operand.vmem [shape: f32[1,32], index: 8, kind: input, shape index: {}]
  %s9 = inlined_call_operand.vmem [shape: bf16[32,128], index: 9, kind: input, shape index: {}]
  %s10 = inlined_call_operand.vmem [shape: f32[1,128], index: 10, kind: input, shape index: {}]
  %s11 = inlined_call_operand.vmem [shape: bf16[16,128], index: 11, kind: output, shape index: {}]
  %s12 = sld [smem:[#allocation0]]
  $region77: #{sequence_model_forward.1} parent=0
    _
  %s14 = ssub.s32 1, %s12
  %s15 = scalar_select 0, %s14, %s12
  loop: start=0, step=1, limit=4
  $region2: #{sequence_model_forward.1} parent=0 // loop_pre_header
    _
  $region3: #{sequence_model_forward.1} parent=0 // loop_header
    %s17 = sphi 0, %s21
    %p18 = scmp.ge.s32.totalorder %s17, 4
    %s27 = sphi 0, %s29
    %s30 = sphi 0, %s27
    %s31 = sphi 0, %s30
    %s47 = sphi 0, %s31
    %s51 = sphi 0, %s51
    %s53 = sphi 0, %s51
    %s54 = sphi 0, %s53
    %s68 = sphi 0, %s54
    %s72 = sphi 0, %s72
    %s74 = sphi 0, %s72
    %s75 = sphi 0, %s74
    %s89 = sphi 0, %s75
    %s93 = sphi 0, %s93
    %s95 = sphi 0, %s93
    %s96 = sphi 0, %s95
    %s110 = sphi 0, %s96
    %s114 = sphi 0, %s114
    %s116 = sphi 0, %s114
    %s117 = sphi 0, %s116
    %s131 = sphi 0, %s117
    %s135 = sphi 0, %s135
    %s137 = sphi 0, %s135
    %s138 = sphi 0, %s137
    %s152 = sphi 0, %s138
    %s156 = sphi 0, %s156
    %s158 = sphi 0, %s156
    %s159 = sphi 0, %s158
    %s173 = sphi 0, %s159
    %s177 = sphi 0, %s177
    %s179 = sphi 0, %s177
    %s180 = sphi 0, %s179
    %s194 = sphi 0, %s180
    %s198 = sphi 0, %s198
    %s200 = sphi 0, %s198
    %s201 = sphi 0, %s200
    %s215 = sphi 0, %s201
    %s219 = sphi 0, %s219
    %s221 = sphi 0, %s219
    %s222 = sphi 0, %s221
    %s236 = sphi 0, %s222
    %s240 = sphi 0, %s240
    %s242 = sphi 0, %s240
    %s243 = sphi 0, %s242
    %s257 = sphi 0, %s243
    %s263 = sphi 0, %s265
    %s266 = sphi 0, %s263
    %s267 = sphi 0, %s266
    %s283 = sphi 0, %s267
  $region4: #{sequence_model_forward.1} parent=0 // loop_header_branch
    %20 = sbr.rel (%p18) target = $region8
  $region5: #{sequence_model_forward.1} parent=0 // loop_body
    %s22 = ssub.s32 %s17, 1
    %s23 = ssub.s32 %s17, 2
    %s24 = sadd.s32 %s17, 1
    %s25 = ssub.s32 %s17, %s24
    %p26 = scmp.eq.s32.totalorder %s25, 0
    %s28 = sadd.s32 %s27, 1
    %s29 = scalar_select %p26, %s27, %s28
    %p32 = pneg %p26
    %p33 = scmp.eq.s32.totalorder %s17, 1
    %p34 = por %p32, %p33
    %p35 = scmp.ne.s32.totalorder %s27, %s30
    %p36 = scmp.eq.s32.totalorder %s17, 0
    %p37 = por %p35, %p36
    %p38 = scmp.ne.s32.totalorder %s27, %s30
    %p39 = scmp.eq.s32.totalorder %s22, 1
    %p40 = por %p38, %p39
    %p41 = scmp.ne.s32.totalorder %s30, %s31
    %p42 = scmp.eq.s32.totalorder %s22, 0
    %p43 = por %p41, %p42
    %p44 = scmp.ne.s32.totalorder %s30, %s31
    %p45 = scmp.eq.s32.totalorder %s23, 1
    %p46 = por %p44, %p45
    %p48 = scmp.ne.s32.totalorder %s31, %s47
    %p49 = scmp.eq.s32.totalorder %s23, 0
    %p50 = por %p48, %p49
    %s52 = sadd.s32 %s51, 1
    %p55 = scmp.eq.s32.totalorder %s17, 1
    %p56 = scmp.ne.s32.totalorder %s51, %s53
    %p57 = scmp.eq.s32.totalorder %s17, 0
    %p58 = por %p56, %p57
    %p59 = scmp.ne.s32.totalorder %s51, %s53
    %p60 = scmp.eq.s32.totalorder %s22, 1
    %p61 = por %p59, %p60
    %p62 = scmp.ne.s32.totalorder %s53, %s54
    %p63 = scmp.eq.s32.totalorder %s22, 0
    %p64 = por %p62, %p63
    %p65 = scmp.ne.s32.totalorder %s53, %s54
    %p66 = scmp.eq.s32.totalorder %s23, 1
    %p67 = por %p65, %p66
    %p69 = scmp.ne.s32.totalorder %s54, %s68
    %p70 = scmp.eq.s32.totalorder %s23, 0
    %p71 = por %p69, %p70
    %s73 = sadd.s32 %s72, 1
    %p76 = scmp.eq.s32.totalorder %s17, 1
    %p77 = scmp.ne.s32.totalorder %s72, %s74
    %p78 = scmp.eq.s32.totalorder %s17, 0
    %p79 = por %p77, %p78
    %p80 = scmp.ne.s32.totalorder %s72, %s74
    %p81 = scmp.eq.s32.totalorder %s22, 1
    %p82 = por %p80, %p81
    %p83 = scmp.ne.s32.totalorder %s74, %s75
    %p84 = scmp.eq.s32.totalorder %s22, 0
    %p85 = por %p83, %p84
    %p86 = scmp.ne.s32.totalorder %s74, %s75
    %p87 = scmp.eq.s32.totalorder %s23, 1
    %p88 = por %p86, %p87
    %p90 = scmp.ne.s32.totalorder %s75, %s89
    %p91 = scmp.eq.s32.totalorder %s23, 0
    %p92 = por %p90, %p91
    %s94 = sadd.s32 %s93, 1
    %p97 = scmp.eq.s32.totalorder %s17, 1
    %p98 = scmp.ne.s32.totalorder %s93, %s95
    %p99 = scmp.eq.s32.totalorder %s17, 0
    %p100 = por %p98, %p99
    %p101 = scmp.ne.s32.totalorder %s93, %s95
    %p102 = scmp.eq.s32.totalorder %s22, 1
    %p103 = por %p101, %p102
    %p104 = scmp.ne.s32.totalorder %s95, %s96
    %p105 = scmp.eq.s32.totalorder %s22, 0
    %p106 = por %p104, %p105
    %p107 = scmp.ne.s32.totalorder %s95, %s96
    %p108 = scmp.eq.s32.totalorder %s23, 1
    %p109 = por %p107, %p108
    %p111 = scmp.ne.s32.totalorder %s96, %s110
    %p112 = scmp.eq.s32.totalorder %s23, 0
    %p113 = por %p111, %p112
    %s115 = sadd.s32 %s114, 1
    %p118 = scmp.eq.s32.totalorder %s17, 1
    %p119 = scmp.ne.s32.totalorder %s114, %s116
    %p120 = scmp.eq.s32.totalorder %s17, 0
    %p121 = por %p119, %p120
    %p122 = scmp.ne.s32.totalorder %s114, %s116
    %p123 = scmp.eq.s32.totalorder %s22, 1
    %p124 = por %p122, %p123
    %p125 = scmp.ne.s32.totalorder %s116, %s117
    %p126 = scmp.eq.s32.totalorder %s22, 0
    %p127 = por %p125, %p126
    %p128 = scmp.ne.s32.totalorder %s116, %s117
    %p129 = scmp.eq.s32.totalorder %s23, 1
    %p130 = por %p128, %p129
    %p132 = scmp.ne.s32.totalorder %s117, %s131
    %p133 = scmp.eq.s32.totalorder %s23, 0
    %p134 = por %p132, %p133
    %s136 = sadd.s32 %s135, 1
    %p139 = scmp.eq.s32.totalorder %s17, 1
    %p140 = scmp.ne.s32.totalorder %s135, %s137
    %p141 = scmp.eq.s32.totalorder %s17, 0
    %p142 = por %p140, %p141
    %p143 = scmp.ne.s32.totalorder %s135, %s137
    %p144 = scmp.eq.s32.totalorder %s22, 1
    %p145 = por %p143, %p144
    %p146 = scmp.ne.s32.totalorder %s137, %s138
    %p147 = scmp.eq.s32.totalorder %s22, 0
    %p148 = por %p146, %p147
    %p149 = scmp.ne.s32.totalorder %s137, %s138
    %p150 = scmp.eq.s32.totalorder %s23, 1
    %p151 = por %p149, %p150
    %p153 = scmp.ne.s32.totalorder %s138, %s152
    %p154 = scmp.eq.s32.totalorder %s23, 0
    %p155 = por %p153, %p154
    %s157 = sadd.s32 %s156, 1
    %p160 = scmp.eq.s32.totalorder %s17, 1
    %p161 = scmp.ne.s32.totalorder %s156, %s158
    %p162 = scmp.eq.s32.totalorder %s17, 0
    %p163 = por %p161, %p162
    %p164 = scmp.ne.s32.totalorder %s156, %s158
    %p165 = scmp.eq.s32.totalorder %s22, 1
    %p166 = por %p164, %p165
    %p167 = scmp.ne.s32.totalorder %s158, %s159
    %p168 = scmp.eq.s32.totalorder %s22, 0
    %p169 = por %p167, %p168
    %p170 = scmp.ne.s32.totalorder %s158, %s159
    %p171 = scmp.eq.s32.totalorder %s23, 1
    %p172 = por %p170, %p171
    %p174 = scmp.ne.s32.totalorder %s159, %s173
    %p175 = scmp.eq.s32.totalorder %s23, 0
    %p176 = por %p174, %p175
    %s178 = sadd.s32 %s177, 1
    %p181 = scmp.eq.s32.totalorder %s17, 1
    %p182 = scmp.ne.s32.totalorder %s177, %s179
    %p183 = scmp.eq.s32.totalorder %s17, 0
    %p184 = por %p182, %p183
    %p185 = scmp.ne.s32.totalorder %s177, %s179
    %p186 = scmp.eq.s32.totalorder %s22, 1
    %p187 = por %p185, %p186
    %p188 = scmp.ne.s32.totalorder %s179, %s180
    %p189 = scmp.eq.s32.totalorder %s22, 0
    %p190 = por %p188, %p189
    %p191 = scmp.ne.s32.totalorder %s179, %s180
    %p192 = scmp.eq.s32.totalorder %s23, 1
    %p193 = por %p191, %p192
    %p195 = scmp.ne.s32.totalorder %s180, %s194
    %p196 = scmp.eq.s32.totalorder %s23, 0
    %p197 = por %p195, %p196
    %s199 = sadd.s32 %s198, 1
    %p202 = scmp.eq.s32.totalorder %s17, 1
    %p203 = scmp.ne.s32.totalorder %s198, %s200
    %p204 = scmp.eq.s32.totalorder %s17, 0
    %p205 = por %p203, %p204
    %p206 = scmp.ne.s32.totalorder %s198, %s200
    %p207 = scmp.eq.s32.totalorder %s22, 1
    %p208 = por %p206, %p207
    %p209 = scmp.ne.s32.totalorder %s200, %s201
    %p210 = scmp.eq.s32.totalorder %s22, 0
    %p211 = por %p209, %p210
    %p212 = scmp.ne.s32.totalorder %s200, %s201
    %p213 = scmp.eq.s32.totalorder %s23, 1
    %p214 = por %p212, %p213
    %p216 = scmp.ne.s32.totalorder %s201, %s215
    %p217 = scmp.eq.s32.totalorder %s23, 0
    %p218 = por %p216, %p217
    %s220 = sadd.s32 %s219, 1
    %p223 = scmp.eq.s32.totalorder %s17, 1
    %p224 = scmp.ne.s32.totalorder %s219, %s221
    %p225 = scmp.eq.s32.totalorder %s17, 0
    %p226 = por %p224, %p225
    %p227 = scmp.ne.s32.totalorder %s219, %s221
    %p228 = scmp.eq.s32.totalorder %s22, 1
    %p229 = por %p227, %p228
    %p230 = scmp.ne.s32.totalorder %s221, %s222
    %p231 = scmp.eq.s32.totalorder %s22, 0
    %p232 = por %p230, %p231
    %p233 = scmp.ne.s32.totalorder %s221, %s222
    %p234 = scmp.eq.s32.totalorder %s23, 1
    %p235 = por %p233, %p234
    %p237 = scmp.ne.s32.totalorder %s222, %s236
    %p238 = scmp.eq.s32.totalorder %s23, 0
    %p239 = por %p237, %p238
    %s241 = sadd.s32 %s240, 1
    %p244 = scmp.eq.s32.totalorder %s17, 1
    %p245 = scmp.ne.s32.totalorder %s240, %s242
    %p246 = scmp.eq.s32.totalorder %s17, 0
    %p247 = por %p245, %p246
    %p248 = scmp.ne.s32.totalorder %s240, %s242
    %p249 = scmp.eq.s32.totalorder %s22, 1
    %p250 = por %p248, %p249
    %p251 = scmp.ne.s32.totalorder %s242, %s243
    %p252 = scmp.eq.s32.totalorder %s22, 0
    %p253 = por %p251, %p252
    %p254 = scmp.ne.s32.totalorder %s242, %s243
    %p255 = scmp.eq.s32.totalorder %s23, 1
    %p256 = por %p254, %p255
    %p258 = scmp.ne.s32.totalorder %s243, %s257
    %p259 = scmp.eq.s32.totalorder %s23, 0
    %p260 = por %p258, %p259
    %s261 = ssub.s32 %s17, %s24
    %p262 = scmp.eq.s32.totalorder %s261, 0
    %s264 = sadd.s32 %s263, 1
    %s265 = scalar_select %p262, %s263, %s264
    %p268 = pneg %p262
    %p269 = scmp.eq.s32.totalorder %s17, 1
    %p270 = por %p268, %p269
    %p271 = scmp.ne.s32.totalorder %s263, %s266
    %p272 = scmp.eq.s32.totalorder %s17, 0
    %p273 = por %p271, %p272
    %p274 = scmp.ne.s32.totalorder %s263, %s266
    %p275 = scmp.eq.s32.totalorder %s22, 1
    %p276 = por %p274, %p275
    %p277 = scmp.ne.s32.totalorder %s266, %s267
    %p278 = scmp.eq.s32.totalorder %s22, 0
    %p279 = por %p277, %p278
    %p280 = scmp.ne.s32.totalorder %s266, %s267
    %p281 = scmp.eq.s32.totalorder %s23, 1
    %p282 = por %p280, %p281
    %p284 = scmp.ne.s32.totalorder %s267, %s283
    %p285 = scmp.eq.s32.totalorder %s23, 0
    %p286 = por %p284, %p285
    %p287 = scmp.le.s32.totalorder 1, %s17
    %p288 = scmp.lt.s32.totalorder %s17, 3
    %p289 = pnand %p287, %p288
    %p290 = pneg %p289
    // Predicated region
    $region9: #{sequence_model_forward.1} parent=5 // pred_check
      _
    $region10: #{sequence_model_forward.1} parent=5 // pred_check_branch
      %292 = sbr.rel (%p289) target = $region12
    $region11: #{sequence_model_forward.1} parent=5 // pred_region
      %s293 = ssub.s32 %s17, 1
      // Predicated region
      $region13: #{sequence_model_forward.1} parent=11 // pred_check
        %p294 = pneg %p64
      $region14: #{sequence_model_forward.1} parent=11 // pred_check_branch
        %296 = sbr.rel (%p294) target = $region16
      $region15: #{sequence_model_forward.1} parent=11 // pred_region
        _
      $region16: #{sequence_model_forward.1} parent=11 // pred_fallthru
        _
      // Predicated region
      $region17: #{sequence_model_forward.1} parent=11 // pred_check
        %p297 = pneg %p85
      $region18: #{sequence_model_forward.1} parent=11 // pred_check_branch
        %299 = sbr.rel (%p297) target = $region20
      $region19: #{sequence_model_forward.1} parent=11 // pred_region
        _
      $region20: #{sequence_model_forward.1} parent=11 // pred_fallthru
        _
      // Predicated region
      $region21: #{sequence_model_forward.1} parent=11 // pred_check
        %p300 = pneg %p106
      $region22: #{sequence_model_forward.1} parent=11 // pred_check_branch
        %302 = sbr.rel (%p300) target = $region24
      $region23: #{sequence_model_forward.1} parent=11 // pred_region
        _
      $region24: #{sequence_model_forward.1} parent=11 // pred_fallthru
        _
      // Predicated region
      $region25: #{sequence_model_forward.1} parent=11 // pred_check
        %p303 = pneg %p127
      $region26: #{sequence_model_forward.1} parent=11 // pred_check_branch
        %305 = sbr.rel (%p303) target = $region28
      $region27: #{sequence_model_forward.1} parent=11 // pred_region
        _
      $region28: #{sequence_model_forward.1} parent=11 // pred_fallthru
        _
      // Predicated region
      $region29: #{sequence_model_forward.1} parent=11 // pred_check
        %p306 = pneg %p148
      $region30: #{sequence_model_forward.1} parent=11 // pred_check_branch
        %308 = sbr.rel (%p306) target = $region32
      $region31: #{sequence_model_forward.1} parent=11 // pred_region
        _
      $region32: #{sequence_model_forward.1} parent=11 // pred_fallthru
        _
      // Predicated region
      $region33: #{sequence_model_forward.1} parent=11 // pred_check
        %p309 = pneg %p169
      $region34: #{sequence_model_forward.1} parent=11 // pred_check_branch
        %311 = sbr.rel (%p309) target = $region36
      $region35: #{sequence_model_forward.1} parent=11 // pred_region
        _
      $region36: #{sequence_model_forward.1} parent=11 // pred_fallthru
        _
      // Predicated region
      $region37: #{sequence_model_forward.1} parent=11 // pred_check
        %p312 = pneg %p190
      $region38: #{sequence_model_forward.1} parent=11 // pred_check_branch
        %314 = sbr.rel (%p312) target = $region40
      $region39: #{sequence_model_forward.1} parent=11 // pred_region
        _
      $region40: #{sequence_model_forward.1} parent=11 // pred_fallthru
        _
      // Predicated region
      $region41: #{sequence_model_forward.1} parent=11 // pred_check
        %p315 = pneg %p211
      $region42: #{sequence_model_forward.1} parent=11 // pred_check_branch
        %317 = sbr.rel (%p315) target = $region44
      $region43: #{sequence_model_forward.1} parent=11 // pred_region
        _
      $region44: #{sequence_model_forward.1} parent=11 // pred_fallthru
        _
      // Predicated region
      $region45: #{sequence_model_forward.1} parent=11 // pred_check
        %p318 = pneg %p232
      $region46: #{sequence_model_forward.1} parent=11 // pred_check_branch
        %320 = sbr.rel (%p318) target = $region48
      $region47: #{sequence_model_forward.1} parent=11 // pred_region
        _
      $region48: #{sequence_model_forward.1} parent=11 // pred_fallthru
        _
      // Predicated region
      $region49: #{sequence_model_forward.1} parent=11 // pred_check
        %p321 = pneg %p253
      $region50: #{sequence_model_forward.1} parent=11 // pred_check_branch
        %323 = sbr.rel (%p321) target = $region52
      $region51: #{sequence_model_forward.1} parent=11 // pred_region
        _
      $region52: #{sequence_model_forward.1} parent=11 // pred_fallthru
        _
    $region12: #{sequence_model_forward.1} parent=5 // pred_fallthru
      _
    %p324 = scmp.lt.s32.totalorder %s17, 2
    // Predicated region
    $region53: #{sequence_model_forward.1} parent=5 // pred_check
      %p325 = pneg %p324
    $region54: #{sequence_model_forward.1} parent=5 // pred_check_branch
      %327 = sbr.rel (%p325) target = $region56
    $region55: #{sequence_model_forward.1} parent=5 // pred_region
      // Predicated region
      $region57: #{sequence_model_forward.1} parent=55 // pred_check
        %p328 = pneg %p37
      $region58: #{sequence_model_forward.1} parent=55 // pred_check_branch
        %330 = sbr.rel (%p328) target = $region60
      $region59: #{sequence_model_forward.1} parent=55 // pred_region
        %p331 = scmp.lt.s32.totalorder %s17, 1
        %s332 = scalar_select %p331, %s17, 1
        %s333 = smul.addr %s332, 8
        %s334 = scalar_lea.vmem %s0, %s333
      $region60: #{sequence_model_forward.1} parent=55 // pred_fallthru
        _
    $region56: #{sequence_model_forward.1} parent=5 // pred_fallthru
      _
    %p335 = scmp.le.s32.totalorder 1, %s17
    %p336 = scmp.lt.s32.totalorder %s17, 3
    %p337 = pnand %p335, %p336
    %p338 = pneg %p337
    // Predicated region
    $region61: #{sequence_model_forward.1} parent=5 // pred_check
      _
    $region62: #{sequence_model_forward.1} parent=5 // pred_check_branch
      %340 = sbr.rel (%p337) target = $region64
    $region63: #{sequence_model_forward.1} parent=5 // pred_region
      %s341 = ssub.s32 %s17, 1
      %p342 = scmp.lt.s32.totalorder %s22, 1
      %s343 = scalar_select %p342, %s22, 1
      %s344 = smul.addr %s343, 8
      %s345 = scalar_lea.vmem %s0, %s344
      %p346 = pneg %p43
      %p347 = pneg %p40
      %p348 = pneg %p64
      %p349 = pneg %p61
      %p350 = pneg %p85
      %p351 = pneg %p82
      %p352 = pneg %p106
      %p353 = pneg %p103
      %p354 = pneg %p127
      %p355 = pneg %p124
      %p356 = pneg %p148
      %p357 = pneg %p145
      %p358 = pneg %p169
      %p359 = pneg %p166
      %p360 = pneg %p190
      %p361 = pneg %p187
      %p362 = pneg %p211
      %p363 = pneg %p208
      %p364 = pneg %p232
      %p365 = pneg %p229
      %p366 = pneg %p253
      %p367 = pneg %p250
      %p368 = pneg %p279
      %p369 = pneg %p276
      %p370 = scmp.lt.s32.totalorder %s22, 1
      %s371 = scalar_select %p370, %s22, 1
      %s372 = smul.addr %s371, 4
      %s373 = scalar_lea.vmem %s11, %s372
      %p374 = scmp.lt.s32.totalorder %s22, 1
      %s375 = scalar_select %p374, %s22, 1
      %s376 = smul.addr %s375, 8
      %s377 = scalar_lea.vmem %s0, %s376
      %p378 = scmp.lt.s32.totalorder %s22, 1
      %s379 = scalar_select %p378, %s22, 1
      %s380 = smul.addr %s379, 4
      %s381 = scalar_lea.vmem %s11, %s380
      %v383 = vld [vmem:[%s377] sm:$0xff]
      %v384 = vpack.c.bf16 %v383, %v383
      %v385 = vld [vmem:[%s1] sm:$0x3]
      %v386 = vld [vmem:[%s2] sm:$0x1]
      %v388 = vperm.slane %v386, 0
      %vm390 = vcmask 31744
      %v392 = vsel %vm390, %v384, 0
      %vm394 = vcmask 1041408
      %v396 = vsel %vm394, %v385, 0
      %398 = vmatpush.bf16.msra.mxu0 0
      %399 = vmatpush.bf16.msra.mxu0 0
      %400 = vmatpush.bf16.msra.mxu0 0
      %401 = vmatpush.bf16.msra.mxu0 0
      %402 = vmatpush.bf16.msra.mxu0 0
      %403 = vmatpush.bf16.msra.mxu0 0
      %404 = vmatpush.bf16.msra.mxu0 0
      %405 = vmatpush.bf16.msra.mxu0 %v396
      %406 = vmatmul.bf16.gmra.mxu0 %v392
      %v407 = vpop.f32.mrf.mxu0
      %v408 = vadd.f32 %v388, %v407
      %v409 = vpop.f32.mrf.mxu0
      %410 = vdwg.mxu0
      %vm411 = vcmask 261120
      %v412 = vsel %vm411, %v408, 0.0
      %413 = vadd.xlane.f32.xlu0 %v412
      %v414 = vpop.xlane.xlu0 %413
      %v415 = vmul.f32 %v408, %v408
      %v416 = vsel %vm411, %v415, 0.0
      %417 = vadd.xlane.f32.xlu0 %v416
      %v418 = vpop.xlane.xlu0 %417
      %v419 = vmul.f32 %v414, 0.03125
      %v420 = vmul.f32 %v418, 0.03125
      %v421 = vmul.f32 %v419, %v419
      %v422 = vsub.f32 %v420, %v421
      %v423 = vsub.f32 %v408, %v419
      %v424 = vadd.f32 %v422, 1e-05
      %v425 = vrsqrt.pop %v424
      %v426 = vmul.f32 %v425, %v424
      %v427 = vmul.f32 %v426, %v425
      %v428 = vmul.f32 0.5, %v427
      %v429 = vsub.f32 1.5, %v428
      %v430 = vmul.f32 %v425, %v429
      %vm431 = vweird.f32 %v424
      %vm432 = vweird.f32 %v425
      %vm433 = vmor %vm431, %vm432
      %v434 = vsel %vm433, %v425, %v430
      %v435 = vmul.f32 %v423, %v434
      %v436 = vld [vmem:[%s3] sm:$0x1]
      %v438 = vperm.slane %v436, 0
      %v440 = vmul.f32 %v435, %v438
      %v441 = vld [vmem:[%s4] sm:$0x1]
      %v443 = vperm.slane %v441, 0
      %v445 = vadd.f32 %v440, %v443
      %v446 = vpack.c.bf16 %v445, %v445
      %v447 = vld [vmem:[%s5] sm:$0xf]
      %v448 = vld [vmem:[%s5 + $0x4] sm:$0xf]
      %v449 = vld [vmem:[%s5 + $0x8] sm:$0xf]
      %v450 = vld [vmem:[%s5 + $0xc] sm:$0xf]
      %v451 = vld [vmem:[%s6] sm:$0x1]
      %v453 = vperm.slane %v451, 0
      %v459 = vunpack.c.l.b16 %v447
      %v460 = vunpack.c.l.b16 %v448
      %v461 = vunpack.c.l.b16 %v449
      %v462 = vunpack.c.l.b16 %v450
      %v463 = vpack.c.b16 %v460, %v459
      %v464 = vpack.c.b16 %v462, %v461
      %v468 = vsel %vm411, %v446, 0
      %470 = vmatpush.bf16.msra.mxu0 0
      %471 = vmatpush.bf16.msra.mxu0 0
      %472 = vmatpush.bf16.msra.mxu0 0
      %473 = vmatpush.bf16.msra.mxu0 0
      %474 = vmatpush.bf16.msra.mxu0 0
      %475 = vmatpush.bf16.msra.mxu0 0
      %476 = vmatpush.bf16.msra.mxu0 %v464
      %477 = vmatpush.bf16.msra.mxu0 %v463
      %478 = vmatmul.bf16.gmra.mxu0 %v468
      %v479 = vpop.f32.mrf.mxu0
      %v480 = vadd.f32 %v453, %v479
      %v481 = vpop.f32.mrf.mxu0
      %482 = vdwg.mxu0
      %v483 = vmul.f32 %v480, %v480
      %v484 = vmul.f32 %v480, %v483
      %v485 = vmul.f32 %v484, 0.044715
      %v486 = vadd.f32 %v480, %v485
      %v487 = vmul.f32 %v486, 0.7978846
      %v488 = vtanh.pop %v487
      %v489 = vadd.f32 %v488, 1.0
      %v490 = vmul.f32 %v489, 0.5
      %v491 = vmul.f32 %v480, %v490
      %v492 = vpack.c.bf16 %v491, %v491
      %v493 = vld [vmem:[%s7] sm:$0xf]
      %v494 = vld [vmem:[%s7 + $0x4] sm:$0xf]
      %v495 = vld [vmem:[%s7 + $0x8] sm:$0xf]
      %v496 = vld [vmem:[%s7 + $0xc] sm:$0xf]
      %v497 = vld [vmem:[%s7 + $0x10] sm:$0xf]
      %v498 = vld [vmem:[%s7 + $0x14] sm:$0xf]
      %v499 = vld [vmem:[%s7 + $0x18] sm:$0xf]
      %v500 = vld [vmem:[%s7 + $0x1c] sm:$0xf]
      %v501 = vld [vmem:[%s8] sm:$0x1]
      %v503 = vperm.slane %v501, 0
      %v513 = vunpack.c.l.b16 %v493
      %v514 = vunpack.c.l.b16 %v494
      %v515 = vunpack.c.l.b16 %v495
      %v516 = vunpack.c.l.b16 %v496
      %v517 = vunpack.c.l.b16 %v497
      %v518 = vunpack.c.l.b16 %v498
      %v519 = vunpack.c.l.b16 %v499
      %v520 = vunpack.c.l.b16 %v500
      %v521 = vpack.c.b16 %v514, %v513
      %v522 = vpack.c.b16 %v516, %v515
      %v523 = vpack.c.b16 %v518, %v517
      %v524 = vpack.c.b16 %v520, %v519
      %vm529 = vcmask 523264
      %v531 = vsel %vm529, %v492, 0
      %533 = vmatpush.bf16.msra.mxu0 0
      %534 = vmatpush.bf16.msra.mxu0 0
      %535 = vmatpush.bf16.msra.mxu0 0
      %536 = vmatpush.bf16.msra.mxu0 0
      %537 = vmatpush.bf16.msra.mxu0 %v524
      %538 = vmatpush.bf16.msra.mxu0 %v523
      %539 = vmatpush.bf16.msra.mxu0 %v522
      %540 = vmatpush.bf16.msra.mxu0 %v521
      %541 = vmatmul.bf16.gmra.mxu0 %v531
      %v542 = vpop.f32.mrf.mxu0
      %v543 = vadd.f32 %v503, %v542
      %v544 = vpop.f32.mrf.mxu0
      %545 = vdwg.mxu0
      %v546 = vadd.f32 %v408, %v543
      %v547 = vpack.c.bf16 %v546, %v546
      %v548 = vld [vmem:[%s9] sm:$0xf]
      %v549 = vld [vmem:[%s9 + $0x4] sm:$0xf]
      %v550 = vld [vmem:[%s9 + $0x8] sm:$0xf]
      %v551 = vld [vmem:[%s9 + $0xc] sm:$0xf]
      %v552 = vld [vmem:[%s10] sm:$0x1]
      %v554 = vperm.slane %v552, 0
      %v560 = vunpack.c.l.b16 %v548
      %v561 = vunpack.c.l.b16 %v549
      %v562 = vunpack.c.l.b16 %v550
      %v563 = vunpack.c.l.b16 %v551
      %v564 = vpack.c.b16 %v561, %v560
      %v565 = vpack.c.b16 %v563, %v562
      %v569 = vsel %vm411, %v547, 0
      %571 = vmatpush.bf16.msra.mxu0 0
      %572 = vmatpush.bf16.msra.mxu0 0
      %573 = vmatpush.bf16.msra.mxu0 0
      %574 = vmatpush.bf16.msra.mxu0 0
      %575 = vmatpush.bf16.msra.mxu0 0
      %576 = vmatpush.bf16.msra.mxu0 0
      %577 = vmatpush.bf16.msra.mxu0 %v565
      %578 = vmatpush.bf16.msra.mxu0 %v564
      %579 = vmatmul.bf16.gmra.mxu0 %v569
      %v580 = vpop.f32.mrf.mxu0
      %v581 = vadd.f32 %v554, %v580
      %v582 = vpop.f32.mrf.mxu0
      %583 = vdwg.mxu0
      %v584 = vpack.c.bf16 %v581, %v581
      %585 = vst [vmem:[%s381] sm:$0xf] %v584
      %p586 = scmp.lt.s32.totalorder %s22, 1
      %s587 = scalar_select %p586, %s22, 1
      %s588 = smul.addr %s587, 4
      %s589 = scalar_lea.vmem %s11, %s588
      // Predicated region
      $region65: #{sequence_model_forward.1} parent=63 // pred_check
        %p590 = pneg %p276
      $region66: #{sequence_model_forward.1} parent=63 // pred_check_branch
        %592 = sbr.rel (%p590) target = $region68
      $region67: #{sequence_model_forward.1} parent=63 // pred_region
        _
      $region68: #{sequence_model_forward.1} parent=63 // pred_fallthru
        _
    $region64: #{sequence_model_forward.1} parent=5 // pred_fallthru
      _
    %p593 = scmp.le.s32.totalorder 2, %s17
    // Predicated region
    $region69: #{sequence_model_forward.1} parent=5 // pred_check
      %p594 = pneg %p593
    $region70: #{sequence_model_forward.1} parent=5 // pred_check_branch
      %596 = sbr.rel (%p594) target = $region72
    $region71: #{sequence_model_forward.1} parent=5 // pred_region
      %s597 = ssub.s32 %s17, 2
      // Predicated region
      $region73: #{sequence_model_forward.1} parent=71 // pred_check
        %p598 = pneg %p282
      $region74: #{sequence_model_forward.1} parent=71 // pred_check_branch
        %600 = sbr.rel (%p598) target = $region76
      $region75: #{sequence_model_forward.1} parent=71 // pred_region
        %p601 = scmp.lt.s32.totalorder %s23, 1
        %s602 = scalar_select %p601, %s23, 1
        %s603 = smul.addr %s602, 4
        %s604 = scalar_lea.vmem %s11, %s603
      $region76: #{sequence_model_forward.1} parent=71 // pred_fallthru
        _
    $region72: #{sequence_model_forward.1} parent=5 // pred_fallthru
      _
  $region6: #{sequence_model_forward.1} parent=0 // loop_footer
    %s21 = sadd.s32 1, %s17
  $region7: #{sequence_model_forward.1} parent=0 // loop_footer_branch
    %16 = sbr.rel target = $region3
  $region8: #{sequence_model_forward.1} parent=0 // loop_exit
    _

</llo_original>
